<compile_context>
chip_gen: v6e
topology: v6e:2x2x1
jax: 0.10.0
libtpu: 0.0.40
codegen_flags: <defaults>
</compile_context>

<pallas_src>
import jax
import jax.numpy as jnp
from jax.experimental import pallas as pl
from jax.experimental.pallas import tpu as pltpu


def value_network_kernel(x_ref, w1_ref, b1_ref, w2_ref, b2_ref,
                         wv_ref, bv_ref, o_ref):
    # fc1 (bf16 x bf16 -> f32 acc) + bias + relu
    h1 = jnp.dot(x_ref[...], w1_ref[...], preferred_element_type=jnp.float32)
    h1 = jnp.maximum(h1 + b1_ref[...], 0.0).astype(jnp.bfloat16)

    # fc2 (bf16 x bf16 -> f32 acc) + bias + relu
    h2 = jnp.dot(h1, w2_ref[...], preferred_element_type=jnp.float32)
    h2 = jnp.maximum(h2 + b2_ref[...], 0.0)

    # v head (out_features = 1): lane reduction on the XLU instead of a
    # 127/128-wasted MXU matmul with a (fc2, 1) RHS.
    v = jnp.sum(h2 * wv_ref[...], axis=-1, keepdims=True) + bv_ref[...]

    # Lane-dense store: broadcast the per-row value across all 128 lanes;
    # the wrapper slices column 0.
    o_ref[...] = jnp.broadcast_to(v, o_ref.shape).astype(o_ref.dtype)


def value_network_forward(x, params, *, block_b=128):
    """x: (B, input_dims) float32. Returns (B, 1) float32 state values."""
    w1, b1, w2, b2, wv, bv = params
    B, D_in = x.shape
    F1 = w1.shape[1]
    F2 = w2.shape[1]

    def round_up(a, m):
        return (a + m - 1) // m * m

    # Batch tile: multiple of 8 sublanes, capped at block_b. Keep block_b
    # modest on v7x (64 MiB VMEM) — 128/256 rows is plenty for this MLP.
    tb = min(block_b, round_up(B, 8))
    B_pad = round_up(B, tb)

    x_bf = x.astype(jnp.bfloat16)
    if B_pad != B:
        x_bf = jnp.pad(x_bf, ((0, B_pad - B), (0, 0)))

    grid = (B_pad // tb,)

    out = pl.pallas_call(
        value_network_kernel,
        out_shape=jax.ShapeDtypeStruct((B_pad, 128), jnp.float32),
        grid=grid,
        in_specs=[
            # streamed per grid step
            pl.BlockSpec((tb, D_in), lambda i: (i, 0)),
            # weights/biases: constant index_map -> VMEM-resident across steps
            pl.BlockSpec((D_in, F1), lambda i: (0, 0)),
            pl.BlockSpec((1, F1), lambda i: (0, 0)),
            pl.BlockSpec((F1, F2), lambda i: (0, 0)),
            pl.BlockSpec((1, F2), lambda i: (0, 0)),
            pl.BlockSpec((1, F2), lambda i: (0, 0)),
            pl.BlockSpec((1, 1), lambda i: (0, 0)),
        ],
        out_specs=pl.BlockSpec((tb, 128), lambda i: (i, 0)),
        compiler_params=pltpu.CompilerParams(
            dimension_semantics=("parallel",),
        ),
    )(x_bf, w1, b1, w2, b2, wv, bv)

    return out[:B, :1]


def init_params(key, input_dims, fc1_dims, fc2_dims):
    """Deterministic init mimicking PyTorch nn.Linear default
    (U[-1/sqrt(fan_in), 1/sqrt(fan_in)]). w1/w2 stored bf16, biases f32,
    head weight stored as a (1, fc2) f32 row."""
    ks = jax.random.split(key, 6)

    def linear(kw, kb, fan_in, fan_out, w_dtype):
        bound = 1.0 / jnp.sqrt(jnp.float32(fan_in))
        w = jax.random.uniform(kw, (fan_in, fan_out), jnp.float32, -bound, bound)
        b = jax.random.uniform(kb, (1, fan_out), jnp.float32, -bound, bound)
        return w.astype(w_dtype), b

    w1, b1 = linear(ks[0], ks[1], input_dims, fc1_dims, jnp.bfloat16)
    w2, b2 = linear(ks[2], ks[3], fc1_dims, fc2_dims, jnp.bfloat16)
    wv_col, bv = linear(ks[4], ks[5], fc2_dims, 1, jnp.float32)
    wv = wv_col.T  # (1, fc2) row for the lane-reduction head
    return (w1, b1, w2, b2, wv, bv)


if __name__ == "__main__":
    # Shapes consistent with the module: state-vector input, two 256-wide
    # hidden layers; batch=256 exercises the batch-tiled grid (2 steps of 128).
    batch = 256
    input_dims = 8
    fc1_dims = 256
    fc2_dims = 256

    key = jax.random.PRNGKey(0)
    k_x, k_p = jax.random.split(key)

    state = jax.random.normal(k_x, (batch, input_dims), dtype=jnp.float32)
    params = init_params(k_p, input_dims, fc1_dims, fc2_dims)

    v = value_network_forward(state, params)
    v = jax.block_until_ready(v)

    # Pure-JAX f32 reference (same math, outside Pallas). Kernel runs bf16
    # weights/activations with f32 accumulation, so tolerance is loosened.
    w1, b1, w2, b2, wv, bv = params
    ref = jnp.maximum(state @ w1.astype(jnp.float32) + b1, 0.0)
    ref = jnp.maximum(ref @ w2.astype(jnp.float32) + b2, 0.0)
    ref = ref @ wv.astype(jnp.float32).T + bv

    assert v.shape == (batch, 1)
    assert jnp.allclose(v, ref, atol=3e-2, rtol=3e-2), "mismatch vs reference"

    print("KERNEL_OK")
</pallas_src>

<mosaic_0001>
module attributes {stable_mosaic.version = 11 : i64} {
  func.func @value_network_kernel(%arg0: i32, %arg1: memref<128x8xbf16, #tpu.memory_space<vmem>>, %arg2: memref<8x256xbf16, #tpu.memory_space<vmem>>, %arg3: memref<1x256xf32, #tpu.memory_space<vmem>>, %arg4: memref<256x256xbf16, #tpu.memory_space<vmem>>, %arg5: memref<1x256xf32, #tpu.memory_space<vmem>>, %arg6: memref<1x256xf32, #tpu.memory_space<vmem>>, %arg7: memref<1x1xf32, #tpu.memory_space<vmem>>, %arg8: memref<128x128xf32, #tpu.memory_space<vmem>>) attributes {dimension_semantics = [#tpu.dimension_semantics<parallel>], iteration_bounds = array<i64: 2>, scalar_prefetch = 0 : i64, scratch_operands = 0 : i64, tpu.core_type = #tpu.core_type<tc>, window_params = [{transform_indices = @transform_0, window_bounds = array<i64: 128, 8>}, {pipeline_mode = #tpu.pipeline_mode<synchronous>, transform_indices = @transform_1, window_bounds = array<i64: 8, 256>}, {pipeline_mode = #tpu.pipeline_mode<synchronous>, transform_indices = @transform_2, window_bounds = array<i64: 1, 256>}, {pipeline_mode = #tpu.pipeline_mode<synchronous>, transform_indices = @transform_3, window_bounds = array<i64: 256, 256>}, {pipeline_mode = #tpu.pipeline_mode<synchronous>, transform_indices = @transform_4, window_bounds = array<i64: 1, 256>}, {pipeline_mode = #tpu.pipeline_mode<synchronous>, transform_indices = @transform_5, window_bounds = array<i64: 1, 256>}, {pipeline_mode = #tpu.pipeline_mode<synchronous>, transform_indices = @transform_6, window_bounds = array<i64: 1, 1>}, {transform_indices = @transform_7, window_bounds = array<i64: 128, 128>}]} {
    %c0 = arith.constant 0 : index
    %c0_0 = arith.constant 0 : index
    %0 = vector.load %arg1[%c0, %c0_0] : memref<128x8xbf16, #tpu.memory_space<vmem>>, vector<128x8xbf16>
    %c0_1 = arith.constant 0 : index
    %c0_2 = arith.constant 0 : index
    %1 = vector.load %arg2[%c0_1, %c0_2] : memref<8x256xbf16, #tpu.memory_space<vmem>>, vector<8x256xbf16>
    %cst = arith.constant dense<0.000000e+00> : vector<128x256xf32>
    %2 = tpu.matmul %0, %1, %cst {dimension_numbers = #tpu.dot_dimension_numbers<[1], [0], [0], [1], [0, 0, 1, 1], [], []>} : vector<128x8xbf16>, vector<8x256xbf16>, vector<128x256xf32> -> vector<128x256xf32>
    %c0_3 = arith.constant 0 : index
    %c0_4 = arith.constant 0 : index
    %3 = vector.load %arg3[%c0_3, %c0_4] : memref<1x256xf32, #tpu.memory_space<vmem>>, vector<1x256xf32>
    %4 = vector.broadcast %3 : vector<1x256xf32> to vector<128x256xf32>
    %5 = arith.addf %2, %4 : vector<128x256xf32>
    %cst_5 = arith.constant 0.000000e+00 : f32
    %6 = vector.broadcast %cst_5 : f32 to vector<128x256xf32>
    %7 = arith.maximumf %5, %6 : vector<128x256xf32>
    %8 = arith.truncf %7 : vector<128x256xf32> to vector<128x256xbf16>
    %c0_6 = arith.constant 0 : index
    %c0_7 = arith.constant 0 : index
    %9 = vector.load %arg4[%c0_6, %c0_7] : memref<256x256xbf16, #tpu.memory_space<vmem>>, vector<256x256xbf16>
    %cst_8 = arith.constant dense<0.000000e+00> : vector<128x256xf32>
    %10 = tpu.matmul %8, %9, %cst_8 {dimension_numbers = #tpu.dot_dimension_numbers<[1], [0], [0], [1], [0, 0, 1, 1], [], []>} : vector<128x256xbf16>, vector<256x256xbf16>, vector<128x256xf32> -> vector<128x256xf32>
    %c0_9 = arith.constant 0 : index
    %c0_10 = arith.constant 0 : index
    %11 = vector.load %arg5[%c0_9, %c0_10] : memref<1x256xf32, #tpu.memory_space<vmem>>, vector<1x256xf32>
    %12 = vector.broadcast %11 : vector<1x256xf32> to vector<128x256xf32>
    %13 = arith.addf %10, %12 : vector<128x256xf32>
    %cst_11 = arith.constant 0.000000e+00 : f32
    %14 = vector.broadcast %cst_11 : f32 to vector<128x256xf32>
    %15 = arith.maximumf %13, %14 : vector<128x256xf32>
    %c0_12 = arith.constant 0 : index
    %c0_13 = arith.constant 0 : index
    %16 = vector.load %arg6[%c0_12, %c0_13] : memref<1x256xf32, #tpu.memory_space<vmem>>, vector<1x256xf32>
    %17 = vector.broadcast %16 : vector<1x256xf32> to vector<128x256xf32>
    %18 = arith.mulf %15, %17 : vector<128x256xf32>
    %cst_14 = arith.constant dense<0.000000e+00> : vector<128xf32>
    %19 = vector.multi_reduction <add>, %18, %cst_14 [1] : vector<128x256xf32> to vector<128xf32>
    %20 = vector.shape_cast %19 : vector<128xf32> to vector<128x1xf32>
    %c0_15 = arith.constant 0 : index
    %c0_16 = arith.constant 0 : index
    %21 = vector.load %arg7[%c0_15, %c0_16] : memref<1x1xf32, #tpu.memory_space<vmem>>, vector<1x1xf32>
    %22 = vector.broadcast %21 : vector<1x1xf32> to vector<128x1xf32>
    %23 = arith.addf %20, %22 : vector<128x1xf32>
    %24 = vector.shape_cast %23 : vector<128x1xf32> to vector<128x1xf32>
    %25 = vector.broadcast %24 : vector<128x1xf32> to vector<128x128xf32>
    %c0_17 = arith.constant 0 : index
    %c0_18 = arith.constant 0 : index
    %26 = vector.load %arg8[%c0_17, %c0_18] : memref<128x128xf32, #tpu.memory_space<vmem>>, vector<128x128xf32>
    tpu.vector_store %arg8[%c0_17, %c0_18], %25 {strides = array<i32>} : memref<128x128xf32, #tpu.memory_space<vmem>>, vector<128x128xf32>,
    return
  }
  func.func @transform_0(%arg0: i32) -> (i32, i32) {
    %c0_i32 = arith.constant 0 : i32
    %c0_i32_0 = arith.constant 0 : i32
    return %arg0, %c0_i32 : i32, i32
  }
  func.func @transform_1(%arg0: i32) -> (i32, i32) {
    %c0_i32 = arith.constant 0 : i32
    %c0_i32_0 = arith.constant 0 : i32
    %c0_i32_1 = arith.constant 0 : i32
    return %c0_i32, %c0_i32_0 : i32, i32
  }
  func.func @transform_2(%arg0: i32) -> (i32, i32) {
    %c0_i32 = arith.constant 0 : i32
    %c0_i32_0 = arith.constant 0 : i32
    %c0_i32_1 = arith.constant 0 : i32
    return %c0_i32, %c0_i32_0 : i32, i32
  }
  func.func @transform_3(%arg0: i32) -> (i32, i32) {
    %c0_i32 = arith.constant 0 : i32
    %c0_i32_0 = arith.constant 0 : i32
    %c0_i32_1 = arith.constant 0 : i32
    return %c0_i32, %c0_i32_0 : i32, i32
  }
  func.func @transform_4(%arg0: i32) -> (i32, i32) {
    %c0_i32 = arith.constant 0 : i32
    %c0_i32_0 = arith.constant 0 : i32
    %c0_i32_1 = arith.constant 0 : i32
    return %c0_i32, %c0_i32_0 : i32, i32
  }
  func.func @transform_5(%arg0: i32) -> (i32, i32) {
    %c0_i32 = arith.constant 0 : i32
    %c0_i32_0 = arith.constant 0 : i32
    %c0_i32_1 = arith.constant 0 : i32
    return %c0_i32, %c0_i32_0 : i32, i32
  }
  func.func @transform_6(%arg0: i32) -> (i32, i32) {
    %c0_i32 = arith.constant 0 : i32
    %c0_i32_0 = arith.constant 0 : i32
    %c0_i32_1 = arith.constant 0 : i32
    return %c0_i32, %c0_i32_0 : i32, i32
  }
  func.func @transform_7(%arg0: i32) -> (i32, i32) {
    %c0_i32 = arith.constant 0 : i32
    %c0_i32_0 = arith.constant 0 : i32
    return %arg0, %c0_i32 : i32, i32
  }
}

</mosaic_0001>

<llo_original>
// kernel: tpu_custom_call.1
$region0: #{tpu_custom_call.1}
  #allocation0 [shape = 'u32[]', space=smem, size = 0x4, offset = 0x4, fixed_abs, tag = 'smem constant byte address 0x4 - core index']
  #allocation1 [shape = 'u32[144,128]{1,0:T(1,128)}', space=vmem, size = 0x12000, scoped, tag = 'internal scratch']
  #allocation2 [shape = 'f32[1,1]{1,0:T(1,128)S(1)}', space=vmem, size = 0x200, scoped, tag = 'scoped memory for tpu_custom_call.1']
  %s0 = inlined_call_operand.vmem [shape: bf16[256,8], index: 0, kind: input, shape index: {}]
  %s1 = inlined_call_operand.vmem [shape: bf16[8,256], index: 1, kind: input, shape index: {}]
  %s2 = inlined_call_operand.vmem [shape: f32[1,256], index: 2, kind: input, shape index: {}]
  %s3 = inlined_call_operand.hbm [shape: bf16[256,256], index: 3, kind: input, shape index: {}]
  %s4 = inlined_call_operand.vmem [shape: f32[1,256], index: 4, kind: input, shape index: {}]
  %s5 = inlined_call_operand.vmem [shape: f32[1,256], index: 5, kind: input, shape index: {}]
  %s6 = inlined_call_operand.<no memory space> [shape: f32[1,1], index: 6, kind: input, shape index: {}]
  %s7 = inlined_call_operand.hbm [shape: f32[256,128], index: 7, kind: output, shape index: {}]
  %s8 = sld [smem:[#allocation0]]
  $region65: #{tpu_custom_call.1} parent=0
    _
  %s10 = ssub.s32 1, %s8
  %s11 = scalar_select 0, %s10, %s8
  %v12 = vstv %s6
  %13 = vst [vmem:[#allocation2] sm:$0x1] %v12
  $region1: #{tpu_custom_call.1} parent=0
    #allocation3 [shape = 'u8[131072]{0}', space=vmem, size = 0x20000, scoped, tag = 'input window, operand 3, single buffered']
    #allocation4 [shape = 's32[2]{0}', space=sflag, size = 0x8, scoped, tag = 'scoped memory for tpu_custom_call.1']
    #allocation5 [shape = 's32[2]{0}', space=sflag, size = 0x8, scoped, tag = 'scoped memory for tpu_custom_call.1']
    #allocation6 [shape = 'u8[131072]{0}', space=vmem, size = 0x20000, scoped, tag = 'output window, operand 0']
    %14 = vsyncpa [#allocation4], 0
    %15 = vsyncpa [#allocation5], 0
    %s16 = scalar_lea.sflag [#allocation5], 1
    %17 = vsyncpa %s16, 0
    loop: start=0, step=1, limit=4
    $region2: #{tpu_custom_call.1} parent=1 // loop_pre_header
      _
    $region3: #{tpu_custom_call.1} parent=1 // loop_header
      %s19 = sphi 0, %s23
      %p20 = scmp.ge.s32.totalorder %s19, 4
      %s29 = sphi 0, %s31
      %s32 = sphi 0, %s29
      %s33 = sphi 0, %s32
      %s49 = sphi 0, %s33
      %s53 = sphi 0, %s53
      %s55 = sphi 0, %s53
      %s56 = sphi 0, %s55
      %s70 = sphi 0, %s56
      %s74 = sphi 0, %s74
      %s76 = sphi 0, %s74
      %s77 = sphi 0, %s76
      %s91 = sphi 0, %s77
      %s95 = sphi 0, %s95
      %s97 = sphi 0, %s95
      %s98 = sphi 0, %s97
      %s112 = sphi 0, %s98
      %s116 = sphi 0, %s116
      %s118 = sphi 0, %s116
      %s119 = sphi 0, %s118
      %s133 = sphi 0, %s119
      %s137 = sphi 0, %s137
      %s139 = sphi 0, %s137
      %s140 = sphi 0, %s139
      %s154 = sphi 0, %s140
      %s158 = sphi 0, %s158
      %s160 = sphi 0, %s158
      %s161 = sphi 0, %s160
      %s175 = sphi 0, %s161
      %s181 = sphi 0, %s183
      %s184 = sphi 0, %s181
      %s185 = sphi 0, %s184
      %s201 = sphi 0, %s185
    $region4: #{tpu_custom_call.1} parent=1 // loop_header_branch
      %22 = sbr.rel (%p20) target = $region8
    $region5: #{tpu_custom_call.1} parent=1 // loop_body
      %s24 = ssub.s32 %s19, 1
      %s25 = ssub.s32 %s19, 2
      %s26 = sadd.s32 %s19, 1
      %s27 = ssub.s32 %s19, %s26
      %p28 = scmp.eq.s32.totalorder %s27, 0
      %s30 = sadd.s32 %s29, 1
      %s31 = scalar_select %p28, %s29, %s30
      %p34 = pneg %p28
      %p35 = scmp.eq.s32.totalorder %s19, 1
      %p36 = por %p34, %p35
      %p37 = scmp.ne.s32.totalorder %s29, %s32
      %p38 = scmp.eq.s32.totalorder %s19, 0
      %p39 = por %p37, %p38
      %p40 = scmp.ne.s32.totalorder %s29, %s32
      %p41 = scmp.eq.s32.totalorder %s24, 1
      %p42 = por %p40, %p41
      %p43 = scmp.ne.s32.totalorder %s32, %s33
      %p44 = scmp.eq.s32.totalorder %s24, 0
      %p45 = por %p43, %p44
      %p46 = scmp.ne.s32.totalorder %s32, %s33
      %p47 = scmp.eq.s32.totalorder %s25, 1
      %p48 = por %p46, %p47
      %p50 = scmp.ne.s32.totalorder %s33, %s49
      %p51 = scmp.eq.s32.totalorder %s25, 0
      %p52 = por %p50, %p51
      %s54 = sadd.s32 %s53, 1
      %p57 = scmp.eq.s32.totalorder %s19, 1
      %p58 = scmp.ne.s32.totalorder %s53, %s55
      %p59 = scmp.eq.s32.totalorder %s19, 0
      %p60 = por %p58, %p59
      %p61 = scmp.ne.s32.totalorder %s53, %s55
      %p62 = scmp.eq.s32.totalorder %s24, 1
      %p63 = por %p61, %p62
      %p64 = scmp.ne.s32.totalorder %s55, %s56
      %p65 = scmp.eq.s32.totalorder %s24, 0
      %p66 = por %p64, %p65
      %p67 = scmp.ne.s32.totalorder %s55, %s56
      %p68 = scmp.eq.s32.totalorder %s25, 1
      %p69 = por %p67, %p68
      %p71 = scmp.ne.s32.totalorder %s56, %s70
      %p72 = scmp.eq.s32.totalorder %s25, 0
      %p73 = por %p71, %p72
      %s75 = sadd.s32 %s74, 1
      %p78 = scmp.eq.s32.totalorder %s19, 1
      %p79 = scmp.ne.s32.totalorder %s74, %s76
      %p80 = scmp.eq.s32.totalorder %s19, 0
      %p81 = por %p79, %p80
      %p82 = scmp.ne.s32.totalorder %s74, %s76
      %p83 = scmp.eq.s32.totalorder %s24, 1
      %p84 = por %p82, %p83
      %p85 = scmp.ne.s32.totalorder %s76, %s77
      %p86 = scmp.eq.s32.totalorder %s24, 0
      %p87 = por %p85, %p86
      %p88 = scmp.ne.s32.totalorder %s76, %s77
      %p89 = scmp.eq.s32.totalorder %s25, 1
      %p90 = por %p88, %p89
      %p92 = scmp.ne.s32.totalorder %s77, %s91
      %p93 = scmp.eq.s32.totalorder %s25, 0
      %p94 = por %p92, %p93
      %s96 = sadd.s32 %s95, 1
      %p99 = scmp.eq.s32.totalorder %s19, 1
      %p100 = scmp.ne.s32.totalorder %s95, %s97
      %p101 = scmp.eq.s32.totalorder %s19, 0
      %p102 = por %p100, %p101
      %p103 = scmp.ne.s32.totalorder %s95, %s97
      %p104 = scmp.eq.s32.totalorder %s24, 1
      %p105 = por %p103, %p104
      %p106 = scmp.ne.s32.totalorder %s97, %s98
      %p107 = scmp.eq.s32.totalorder %s24, 0
      %p108 = por %p106, %p107
      %p109 = scmp.ne.s32.totalorder %s97, %s98
      %p110 = scmp.eq.s32.totalorder %s25, 1
      %p111 = por %p109, %p110
      %p113 = scmp.ne.s32.totalorder %s98, %s112
      %p114 = scmp.eq.s32.totalorder %s25, 0
      %p115 = por %p113, %p114
      %s117 = sadd.s32 %s116, 1
      %p120 = scmp.eq.s32.totalorder %s19, 1
      %p121 = scmp.ne.s32.totalorder %s116, %s118
      %p122 = scmp.eq.s32.totalorder %s19, 0
      %p123 = por %p121, %p122
      %p124 = scmp.ne.s32.totalorder %s116, %s118
      %p125 = scmp.eq.s32.totalorder %s24, 1
      %p126 = por %p124, %p125
      %p127 = scmp.ne.s32.totalorder %s118, %s119
      %p128 = scmp.eq.s32.totalorder %s24, 0
      %p129 = por %p127, %p128
      %p130 = scmp.ne.s32.totalorder %s118, %s119
      %p131 = scmp.eq.s32.totalorder %s25, 1
      %p132 = por %p130, %p131
      %p134 = scmp.ne.s32.totalorder %s119, %s133
      %p135 = scmp.eq.s32.totalorder %s25, 0
      %p136 = por %p134, %p135
      %s138 = sadd.s32 %s137, 1
      %p141 = scmp.eq.s32.totalorder %s19, 1
      %p142 = scmp.ne.s32.totalorder %s137, %s139
      %p143 = scmp.eq.s32.totalorder %s19, 0
      %p144 = por %p142, %p143
      %p145 = scmp.ne.s32.totalorder %s137, %s139
      %p146 = scmp.eq.s32.totalorder %s24, 1
      %p147 = por %p145, %p146
      %p148 = scmp.ne.s32.totalorder %s139, %s140
      %p149 = scmp.eq.s32.totalorder %s24, 0
      %p150 = por %p148, %p149
      %p151 = scmp.ne.s32.totalorder %s139, %s140
      %p152 = scmp.eq.s32.totalorder %s25, 1
      %p153 = por %p151, %p152
      %p155 = scmp.ne.s32.totalorder %s140, %s154
      %p156 = scmp.eq.s32.totalorder %s25, 0
      %p157 = por %p155, %p156
      %s159 = sadd.s32 %s158, 1
      %p162 = scmp.eq.s32.totalorder %s19, 1
      %p163 = scmp.ne.s32.totalorder %s158, %s160
      %p164 = scmp.eq.s32.totalorder %s19, 0
      %p165 = por %p163, %p164
      %p166 = scmp.ne.s32.totalorder %s158, %s160
      %p167 = scmp.eq.s32.totalorder %s24, 1
      %p168 = por %p166, %p167
      %p169 = scmp.ne.s32.totalorder %s160, %s161
      %p170 = scmp.eq.s32.totalorder %s24, 0
      %p171 = por %p169, %p170
      %p172 = scmp.ne.s32.totalorder %s160, %s161
      %p173 = scmp.eq.s32.totalorder %s25, 1
      %p174 = por %p172, %p173
      %p176 = scmp.ne.s32.totalorder %s161, %s175
      %p177 = scmp.eq.s32.totalorder %s25, 0
      %p178 = por %p176, %p177
      %s179 = ssub.s32 %s19, %s26
      %p180 = scmp.eq.s32.totalorder %s179, 0
      %s182 = sadd.s32 %s181, 1
      %s183 = scalar_select %p180, %s181, %s182
      %p186 = pneg %p180
      %p187 = scmp.eq.s32.totalorder %s19, 1
      %p188 = por %p186, %p187
      %p189 = scmp.ne.s32.totalorder %s181, %s184
      %p190 = scmp.eq.s32.totalorder %s19, 0
      %p191 = por %p189, %p190
      %p192 = scmp.ne.s32.totalorder %s181, %s184
      %p193 = scmp.eq.s32.totalorder %s24, 1
      %p194 = por %p192, %p193
      %p195 = scmp.ne.s32.totalorder %s184, %s185
      %p196 = scmp.eq.s32.totalorder %s24, 0
      %p197 = por %p195, %p196
      %p198 = scmp.ne.s32.totalorder %s184, %s185
      %p199 = scmp.eq.s32.totalorder %s25, 1
      %p200 = por %p198, %p199
      %p202 = scmp.ne.s32.totalorder %s185, %s201
      %p203 = scmp.eq.s32.totalorder %s25, 0
      %p204 = por %p202, %p203
      %p205 = scmp.le.s32.totalorder 1, %s19
      %p206 = scmp.lt.s32.totalorder %s19, 3
      %p207 = pnand %p205, %p206
      %p208 = pneg %p207
      // Predicated region
      $region9: #{tpu_custom_call.1} parent=5 // pred_check
        _
      $region10: #{tpu_custom_call.1} parent=5 // pred_check_branch
        %210 = sbr.rel (%p207) target = $region12
      $region11: #{tpu_custom_call.1} parent=5 // pred_region
        %s211 = ssub.s32 %s19, 1
        // Predicated region
        $region13: #{tpu_custom_call.1} parent=11 // pred_check
          %p212 = pneg %p66
        $region14: #{tpu_custom_call.1} parent=11 // pred_check_branch
          %214 = sbr.rel (%p212) target = $region16
        $region15: #{tpu_custom_call.1} parent=11 // pred_region
          _
        $region16: #{tpu_custom_call.1} parent=11 // pred_fallthru
          _
        // Predicated region
        $region17: #{tpu_custom_call.1} parent=11 // pred_check
          %p215 = pneg %p87
        $region18: #{tpu_custom_call.1} parent=11 // pred_check_branch
          %217 = sbr.rel (%p215) target = $region20
        $region19: #{tpu_custom_call.1} parent=11 // pred_region
          _
        $region20: #{tpu_custom_call.1} parent=11 // pred_fallthru
          _
        // Predicated region
        $region21: #{tpu_custom_call.1} parent=11 // pred_check
          %p218 = pneg %p108
        $region22: #{tpu_custom_call.1} parent=11 // pred_check_branch
          %220 = sbr.rel (%p218) target = $region24
        $region23: #{tpu_custom_call.1} parent=11 // pred_region
          %s222 = ssub.s32 4096, 4096
          %223 = vsyncadd [#allocation4], %s222
          %s224 = sshll.u32 [#allocation3], 4
          %s225 = int_to_ptr.vmem [resolvable:$true] %s224
          %230 = dma.hbm_to_vmem [thread:$0]  %s3, 4096, %s225, [#allocation4], 128, 128, 8
        $region24: #{tpu_custom_call.1} parent=11 // pred_fallthru
          _
        // Predicated region
        $region25: #{tpu_custom_call.1} parent=11 // pred_check
          %p231 = pneg %p129
        $region26: #{tpu_custom_call.1} parent=11 // pred_check_branch
          %233 = sbr.rel (%p231) target = $region28
        $region27: #{tpu_custom_call.1} parent=11 // pred_region
          _
        $region28: #{tpu_custom_call.1} parent=11 // pred_fallthru
          _
        // Predicated region
        $region29: #{tpu_custom_call.1} parent=11 // pred_check
          %p234 = pneg %p150
        $region30: #{tpu_custom_call.1} parent=11 // pred_check_branch
          %236 = sbr.rel (%p234) target = $region32
        $region31: #{tpu_custom_call.1} parent=11 // pred_region
          _
        $region32: #{tpu_custom_call.1} parent=11 // pred_fallthru
          _
        // Predicated region
        $region33: #{tpu_custom_call.1} parent=11 // pred_check
          %p237 = pneg %p171
        $region34: #{tpu_custom_call.1} parent=11 // pred_check_branch
          %239 = sbr.rel (%p237) target = $region36
        $region35: #{tpu_custom_call.1} parent=11 // pred_region
          _
        $region36: #{tpu_custom_call.1} parent=11 // pred_fallthru
          _
      $region12: #{tpu_custom_call.1} parent=5 // pred_fallthru
        _
      %p240 = scmp.lt.s32.totalorder %s19, 2
      // Predicated region
      $region37: #{tpu_custom_call.1} parent=5 // pred_check
        %p241 = pneg %p240
      $region38: #{tpu_custom_call.1} parent=5 // pred_check_branch
        %243 = sbr.rel (%p241) target = $region40
      $region39: #{tpu_custom_call.1} parent=5 // pred_region
        // Predicated region
        $region41: #{tpu_custom_call.1} parent=39 // pred_check
          %p244 = pneg %p39
        $region42: #{tpu_custom_call.1} parent=39 // pred_check_branch
          %246 = sbr.rel (%p244) target = $region44
        $region43: #{tpu_custom_call.1} parent=39 // pred_region
          %s247 = smul.u32 16, %s19
          %p248 = scmp.lt.s32.totalorder %s247, 31
          %s249 = scalar_select %p248, %s247, 31
          %s250 = smul.addr %s249, 4
          %s251 = scalar_lea.vmem %s0, %s250
          %s252 = smul.u32 16, %s19
        $region44: #{tpu_custom_call.1} parent=39 // pred_fallthru
          _
      $region40: #{tpu_custom_call.1} parent=5 // pred_fallthru
        _
      %p253 = scmp.le.s32.totalorder 1, %s19
      %p254 = scmp.lt.s32.totalorder %s19, 3
      %p255 = pnand %p253, %p254
      %p256 = pneg %p255
      // Predicated region
      $region45: #{tpu_custom_call.1} parent=5 // pred_check
        _
      $region46: #{tpu_custom_call.1} parent=5 // pred_check_branch
        %258 = sbr.rel (%p255) target = $region48
      $region47: #{tpu_custom_call.1} parent=5 // pred_region
        %s259 = ssub.s32 %s19, 1
        // Predicated region
        $region49: #{tpu_custom_call.1} parent=47 // pred_check
          %p260 = pneg %p108
        $region50: #{tpu_custom_call.1} parent=47 // pred_check_branch
          %262 = sbr.rel (%p260) target = $region52
        $region51: #{tpu_custom_call.1} parent=47 // pred_region
          %263 = dma.done [#allocation4], 4096
        $region52: #{tpu_custom_call.1} parent=47 // pred_fallthru
          _
        %s264 = smul.u32 16, %s24
        %p265 = scmp.lt.s32.totalorder %s264, 31
        %s266 = scalar_select %p265, %s264, 31
        %s267 = smul.addr %s266, 4
        %s268 = scalar_lea.vmem %s0, %s267
        %p269 = pneg %p45
        %p270 = pneg %p42
        %p271 = pneg %p66
        %p272 = pneg %p63
        %p273 = pneg %p87
        %p274 = pneg %p84
        %p275 = pneg %p108
        %p276 = pneg %p105
        %p277 = pneg %p129
        %p278 = pneg %p126
        %p279 = pneg %p150
        %p280 = pneg %p147
        %p281 = pneg %p171
        %p282 = pneg %p168
        %p283 = pneg %p197
        %p284 = pneg %p194
        %s285 = sand.u32 %s184, 1
        %s286 = scalar_lea.sflag [#allocation5], %s285
        %s287 = sand.u32 %s184, 1
        %s288 = smul.addr %s287, 128
        %s289 = scalar_lea.vmem [#allocation6], %s288
        %s290 = smul.u32 16, %s24
        %p291 = scmp.lt.s32.totalorder %s290, 31
        %s292 = scalar_select %p291, %s290, 31
        %s293 = smul.addr %s292, 4
        %s294 = scalar_lea.vmem %s0, %s293
        %s295 = smul.u32 16, %s24
        %s296 = smul.u32 16, %s24
        %v298 = vld [vmem:[%s294] sm:$0xf]
        %v299 = vld [vmem:[%s294 + $0x4] sm:$0xf]
        %v300 = vld [vmem:[%s294 + $0x8] sm:$0xf]
        %v301 = vld [vmem:[%s294 + $0xc] sm:$0xf]
        %v302 = vld [vmem:[%s294 + $0x10] sm:$0xf]
        %v303 = vld [vmem:[%s294 + $0x14] sm:$0xf]
        %v304 = vld [vmem:[%s294 + $0x18] sm:$0xf]
        %v305 = vld [vmem:[%s294 + $0x1c] sm:$0xf]
        %v306 = vld [vmem:[%s294 + $0x20] sm:$0xf]
        %v307 = vld [vmem:[%s294 + $0x24] sm:$0xf]
        %v308 = vld [vmem:[%s294 + $0x28] sm:$0xf]
        %v309 = vld [vmem:[%s294 + $0x2c] sm:$0xf]
        %v310 = vld [vmem:[%s294 + $0x30] sm:$0xf]
        %v311 = vld [vmem:[%s294 + $0x34] sm:$0xf]
        %v312 = vld [vmem:[%s294 + $0x38] sm:$0xf]
        %v313 = vld [vmem:[%s294 + $0x3c] sm:$0xf]
        %v314 = vld [vmem:[%s1] sm:$0xff]
        %v315 = vld [vmem:[%s2] sm:$0x3]
        %v317 = vlaneseq
        %v318 = vshrl.u32 %v317, 7
        %v319 = vsub.s32 0, %v318
        %v320 = vrot.slane %v315, %v319
        %v321 = vlaneseq
        %v322 = vshrl.u32 %v321, 7
        %v323 = vsub.s32 1, %v322
        %v324 = vrot.slane %v315, %v323
        %v343 = vunpack.c.l.b16 %v298
        %v344 = vunpack.c.l.b16 %v299
        %v345 = vunpack.c.l.b16 %v300
        %v346 = vunpack.c.l.b16 %v301
        %v347 = vunpack.c.l.b16 %v302
        %v348 = vunpack.c.l.b16 %v303
        %v349 = vunpack.c.l.b16 %v304
        %v350 = vunpack.c.l.b16 %v305
        %v351 = vunpack.c.l.b16 %v306
        %v352 = vunpack.c.l.b16 %v307
        %v353 = vunpack.c.l.b16 %v308
        %v354 = vunpack.c.l.b16 %v309
        %v355 = vunpack.c.l.b16 %v310
        %v356 = vunpack.c.l.b16 %v311
        %v357 = vunpack.c.l.b16 %v312
        %v358 = vunpack.c.l.b16 %v313
        %v359 = vpack.c.b16 %v344, %v343
        %v360 = vpack.c.b16 %v346, %v345
        %v361 = vpack.c.b16 %v348, %v347
        %v362 = vpack.c.b16 %v350, %v349
        %v363 = vpack.c.b16 %v352, %v351
        %v364 = vpack.c.b16 %v354, %v353
        %v365 = vpack.c.b16 %v356, %v355
        %v366 = vpack.c.b16 %v358, %v357
        %v368 = vunpack.c.l.b16 %v314
        %v369 = vunpack.c.h.b16 %v314
        %v370 = vpack.c.b16 %v368, %v368
        %v371 = vpack.c.b16 %v369, %v369
        %vm372 = vcmask 64512
        %v374 = vsel %vm372, %v359, 0
        %v377 = vsel %vm372, %v360, 0
        %v380 = vsel %vm372, %v361, 0
        %v383 = vsel %vm372, %v362, 0
        %v386 = vsel %vm372, %v363, 0
        %v389 = vsel %vm372, %v364, 0
        %v392 = vsel %vm372, %v365, 0
        %v395 = vsel %vm372, %v366, 0
        %vm397 = vcmask 1043456
        %v399 = vsel %vm397, %v370, 0
        %v402 = vsel %vm397, %v371, 0
        %404 = vmatprep.subr.bf16.mxu0 0
        %405 = vmatpush1.bf16.msra.mxu0 0
        %406 = vmatprep.subr.bf16.mxu0 0
        %407 = vmatpush1.bf16.msra.mxu0 0
        %408 = vmatprep.subr.bf16.mxu0 0
        %409 = vmatpush1.bf16.msra.mxu0 0
        %410 = vmatprep.subr.bf16.mxu0 0
        %411 = vmatpush1.bf16.msra.mxu0 0
        %412 = vmatprep.subr.bf16.mxu0 0
        %413 = vmatpush1.bf16.msra.mxu0 0
        %414 = vmatprep.subr.bf16.mxu0 0
        %415 = vmatpush1.bf16.msra.mxu0 0
        %416 = vmatprep.subr.bf16.mxu0 0
        %417 = vmatpush1.bf16.msra.mxu0 0
        %418 = vmatprep.subr.bf16.mxu0 %v402
        %419 = vmatpush1.bf16.msra.mxu0 %v399
        %420 = vmatprep.subr.bf16.mxu0 0
        %421 = vmatpush2.bf16.msra.mxu0 0
        %422 = vmatprep.subr.bf16.mxu0 0
        %423 = vmatpush2.bf16.msra.mxu0 0
        %424 = vmatprep.subr.bf16.mxu0 0
        %425 = vmatpush2.bf16.msra.mxu0 0
        %426 = vmatprep.subr.bf16.mxu0 0
        %427 = vmatpush2.bf16.msra.mxu0 0
        %428 = vmatprep.subr.bf16.mxu0 0
        %429 = vmatpush2.bf16.msra.mxu0 0
        %430 = vmatprep.subr.bf16.mxu0 0
        %431 = vmatpush2.bf16.msra.mxu0 0
        %432 = vmatprep.subr.bf16.mxu0 0
        %433 = vmatpush2.bf16.msra.mxu0 0
        %434 = vmatprep.subr.bf16.mxu0 0
        %435 = vmatpush2.bf16.msra.mxu0 0
        %436 = vmatprep.mubr.bf16.mxu0 0
        %437 = vmatmul.mubr.bf16.gmra.mxu0 %v374
        %v438 = vpop.f32.mrf.mxu0
        %v439 = vadd.f32 %v320, %v438
        %v440 = vpop.f32.mrf.mxu0
        %v441 = vadd.f32 %v324, %v440
        %v442 = vpop.f32.mrf.mxu0
        %v443 = vadd.f32 %v320, %v442
        %v444 = vpop.f32.mrf.mxu0
        %v445 = vadd.f32 %v324, %v444
        %446 = vmatprep.mubr.bf16.mxu0 0
        %447 = vmatmul.mubr.bf16.gmra.mxu0 %v377
        %v448 = vpop.f32.mrf.mxu0
        %v449 = vadd.f32 %v320, %v448
        %v450 = vpop.f32.mrf.mxu0
        %v451 = vadd.f32 %v324, %v450
        %v452 = vpop.f32.mrf.mxu0
        %v453 = vadd.f32 %v320, %v452
        %v454 = vpop.f32.mrf.mxu0
        %v455 = vadd.f32 %v324, %v454
        %456 = vmatprep.mubr.bf16.mxu0 0
        %457 = vmatmul.mubr.bf16.gmra.mxu0 %v380
        %v458 = vpop.f32.mrf.mxu0
        %v459 = vadd.f32 %v320, %v458
        %v460 = vpop.f32.mrf.mxu0
        %v461 = vadd.f32 %v324, %v460
        %v462 = vpop.f32.mrf.mxu0
        %v463 = vadd.f32 %v320, %v462
        %v464 = vpop.f32.mrf.mxu0
        %v465 = vadd.f32 %v324, %v464
        %466 = vmatprep.mubr.bf16.mxu0 0
        %467 = vmatmul.mubr.bf16.gmra.mxu0 %v383
        %v468 = vpop.f32.mrf.mxu0
        %v469 = vadd.f32 %v320, %v468
        %v470 = vpop.f32.mrf.mxu0
        %v471 = vadd.f32 %v324, %v470
        %v472 = vpop.f32.mrf.mxu0
        %v473 = vadd.f32 %v320, %v472
        %v474 = vpop.f32.mrf.mxu0
        %v475 = vadd.f32 %v324, %v474
        %476 = vmatprep.mubr.bf16.mxu0 0
        %477 = vmatmul.mubr.bf16.gmra.mxu0 %v386
        %v478 = vpop.f32.mrf.mxu0
        %v479 = vadd.f32 %v320, %v478
        %v480 = vpop.f32.mrf.mxu0
        %v481 = vadd.f32 %v324, %v480
        %v482 = vpop.f32.mrf.mxu0
        %v483 = vadd.f32 %v320, %v482
        %v484 = vpop.f32.mrf.mxu0
        %v485 = vadd.f32 %v324, %v484
        %486 = vmatprep.mubr.bf16.mxu0 0
        %487 = vmatmul.mubr.bf16.gmra.mxu0 %v389
        %v488 = vpop.f32.mrf.mxu0
        %v489 = vadd.f32 %v320, %v488
        %v490 = vpop.f32.mrf.mxu0
        %v491 = vadd.f32 %v324, %v490
        %v492 = vpop.f32.mrf.mxu0
        %v493 = vadd.f32 %v320, %v492
        %v494 = vpop.f32.mrf.mxu0
        %v495 = vadd.f32 %v324, %v494
        %496 = vmatprep.mubr.bf16.mxu0 0
        %497 = vmatmul.mubr.bf16.gmra.mxu0 %v392
        %v498 = vpop.f32.mrf.mxu0
        %v499 = vadd.f32 %v320, %v498
        %v500 = vpop.f32.mrf.mxu0
        %v501 = vadd.f32 %v324, %v500
        %v502 = vpop.f32.mrf.mxu0
        %v503 = vadd.f32 %v320, %v502
        %v504 = vpop.f32.mrf.mxu0
        %v505 = vadd.f32 %v324, %v504
        %506 = vmatprep.mubr.bf16.mxu0 0
        %507 = vmatmul.mubr.bf16.gmra.mxu0 %v395
        %v508 = vpop.f32.mrf.mxu0
        %v509 = vadd.f32 %v320, %v508
        %v510 = vpop.f32.mrf.mxu0
        %v511 = vadd.f32 %v324, %v510
        %v512 = vpop.f32.mrf.mxu0
        %v513 = vadd.f32 %v320, %v512
        %v514 = vpop.f32.mrf.mxu0
        %v515 = vadd.f32 %v324, %v514
        %516 = vdwg.mxu0
        %v517 = vmax.f32 %v439, 0.0
        %v518 = vmax.f32 %v441, 0.0
        %v519 = vmax.f32 %v443, 0.0
        %v520 = vmax.f32 %v445, 0.0
        %v521 = vmax.f32 %v449, 0.0
        %v522 = vmax.f32 %v451, 0.0
        %v523 = vmax.f32 %v453, 0.0
        %v524 = vmax.f32 %v455, 0.0
        %v525 = vmax.f32 %v459, 0.0
        %v526 = vmax.f32 %v461, 0.0
        %v527 = vmax.f32 %v463, 0.0
        %v528 = vmax.f32 %v465, 0.0
        %v529 = vmax.f32 %v469, 0.0
        %v530 = vmax.f32 %v471, 0.0
        %v531 = vmax.f32 %v473, 0.0
        %v532 = vmax.f32 %v475, 0.0
        %v533 = vmax.f32 %v479, 0.0
        %v534 = vmax.f32 %v481, 0.0
        %v535 = vmax.f32 %v483, 0.0
        %v536 = vmax.f32 %v485, 0.0
        %v537 = vmax.f32 %v489, 0.0
        %v538 = vmax.f32 %v491, 0.0
        %v539 = vmax.f32 %v493, 0.0
        %v540 = vmax.f32 %v495, 0.0
        %v541 = vmax.f32 %v499, 0.0
        %v542 = vmax.f32 %v501, 0.0
        %v543 = vmax.f32 %v503, 0.0
        %v544 = vmax.f32 %v505, 0.0
        %v545 = vmax.f32 %v509, 0.0
        %v546 = vmax.f32 %v511, 0.0
        %v547 = vmax.f32 %v513, 0.0
        %v548 = vmax.f32 %v515, 0.0
        %v549 = vpack.c.bf16 %v519, %v517
        %v550 = vpack.c.bf16 %v520, %v518
        %v551 = vpack.c.bf16 %v523, %v521
        %v552 = vpack.c.bf16 %v524, %v522
        %v553 = vpack.c.bf16 %v527, %v525
        %v554 = vpack.c.bf16 %v528, %v526
        %v555 = vpack.c.bf16 %v531, %v529
        %v556 = vpack.c.bf16 %v532, %v530
        %v557 = vpack.c.bf16 %v535, %v533
        %v558 = vpack.c.bf16 %v536, %v534
        %v559 = vpack.c.bf16 %v539, %v537
        %v560 = vpack.c.bf16 %v540, %v538
        %v561 = vpack.c.bf16 %v543, %v541
        %v562 = vpack.c.bf16 %v544, %v542
        %v563 = vpack.c.bf16 %v547, %v545
        %v564 = vpack.c.bf16 %v548, %v546
        %v565 = vld [vmem:[#allocation3] sm:$0xff]
        %v566 = vld [vmem:[#allocation3 + $0x8] sm:$0xff]
        %v567 = vld [vmem:[#allocation3 + $0x10] sm:$0xff]
        %v568 = vld [vmem:[#allocation3 + $0x18] sm:$0xff]
        %v569 = vld [vmem:[#allocation3 + $0x20] sm:$0xff]
        %v570 = vld [vmem:[#allocation3 + $0x28] sm:$0xff]
        %v571 = vld [vmem:[#allocation3 + $0x30] sm:$0xff]
        %v572 = vld [vmem:[#allocation3 + $0x38] sm:$0xff]
        %v573 = vld [vmem:[#allocation3 + $0x40] sm:$0xff]
        %v574 = vld [vmem:[#allocation3 + $0x48] sm:$0xff]
        %v575 = vld [vmem:[#allocation3 + $0x50] sm:$0xff]
        %v576 = vld [vmem:[#allocation3 + $0x58] sm:$0xff]
        %v577 = vld [vmem:[#allocation3 + $0x60] sm:$0xff]
        %v578 = vld [vmem:[#allocation3 + $0x68] sm:$0xff]
        %v579 = vld [vmem:[#allocation3 + $0x70] sm:$0xff]
        %v580 = vld [vmem:[#allocation3 + $0x78] sm:$0xff]
        %v581 = vld [vmem:[#allocation3 + $0x80] sm:$0xff]
        %v582 = vld [vmem:[#allocation3 + $0x88] sm:$0xff]
        %v583 = vld [vmem:[#allocation3 + $0x90] sm:$0xff]
        %v584 = vld [vmem:[#allocation3 + $0x98] sm:$0xff]
        %v585 = vld [vmem:[#allocation3 + $0xa0] sm:$0xff]
        %v586 = vld [vmem:[#allocation3 + $0xa8] sm:$0xff]
        %v587 = vld [vmem:[#allocation3 + $0xb0] sm:$0xff]
        %v588 = vld [vmem:[#allocation3 + $0xb8] sm:$0xff]
        %v589 = vld [vmem:[#allocation3 + $0xc0] sm:$0xff]
        %v590 = vld [vmem:[#allocation3 + $0xc8] sm:$0xff]
        %v591 = vld [vmem:[#allocation3 + $0xd0] sm:$0xff]
        %v592 = vld [vmem:[#allocation3 + $0xd8] sm:$0xff]
        %v593 = vld [vmem:[#allocation3 + $0xe0] sm:$0xff]
        %v594 = vld [vmem:[#allocation3 + $0xe8] sm:$0xff]
        %v595 = vld [vmem:[#allocation3 + $0xf0] sm:$0xff]
        %v596 = vld [vmem:[#allocation3 + $0xf8] sm:$0xff]
        %v597 = vld [vmem:[%s4] sm:$0x3]
        %v599 = vlaneseq
        %v600 = vshrl.u32 %v599, 7
        %v601 = vsub.s32 0, %v600
        %v602 = vrot.slane %v597, %v601
        %v603 = vlaneseq
        %v604 = vshrl.u32 %v603, 7
        %v605 = vsub.s32 1, %v604
        %v606 = vrot.slane %v597, %v605
        %v641 = vunpack.c.l.b16 %v565
        %v642 = vunpack.c.h.b16 %v565
        %v643 = vunpack.c.l.b16 %v566
        %v644 = vunpack.c.h.b16 %v566
        %v645 = vunpack.c.l.b16 %v567
        %v646 = vunpack.c.h.b16 %v567
        %v647 = vunpack.c.l.b16 %v568
        %v648 = vunpack.c.h.b16 %v568
        %v649 = vunpack.c.l.b16 %v569
        %v650 = vunpack.c.h.b16 %v569
        %v651 = vunpack.c.l.b16 %v570
        %v652 = vunpack.c.h.b16 %v570
        %v653 = vunpack.c.l.b16 %v571
        %v654 = vunpack.c.h.b16 %v571
        %v655 = vunpack.c.l.b16 %v572
        %v656 = vunpack.c.h.b16 %v572
        %v657 = vunpack.c.l.b16 %v573
        %v658 = vunpack.c.h.b16 %v573
        %v659 = vunpack.c.l.b16 %v574
        %v660 = vunpack.c.h.b16 %v574
        %v661 = vunpack.c.l.b16 %v575
        %v662 = vunpack.c.h.b16 %v575
        %v663 = vunpack.c.l.b16 %v576
        %v664 = vunpack.c.h.b16 %v576
        %v665 = vunpack.c.l.b16 %v577
        %v666 = vunpack.c.h.b16 %v577
        %v667 = vunpack.c.l.b16 %v578
        %v668 = vunpack.c.h.b16 %v578
        %v669 = vunpack.c.l.b16 %v579
        %v670 = vunpack.c.h.b16 %v579
        %v671 = vunpack.c.l.b16 %v580
        %v672 = vunpack.c.h.b16 %v580
        %v673 = vunpack.c.l.b16 %v581
        %v674 = vunpack.c.h.b16 %v581
        %v675 = vunpack.c.l.b16 %v582
        %v676 = vunpack.c.h.b16 %v582
        %v677 = vunpack.c.l.b16 %v583
        %v678 = vunpack.c.h.b16 %v583
        %v679 = vunpack.c.l.b16 %v584
        %v680 = vunpack.c.h.b16 %v584
        %v681 = vunpack.c.l.b16 %v585
        %v682 = vunpack.c.h.b16 %v585
        %v683 = vunpack.c.l.b16 %v586
        %v684 = vunpack.c.h.b16 %v586
        %v685 = vunpack.c.l.b16 %v587
        %v686 = vunpack.c.h.b16 %v587
        %v687 = vunpack.c.l.b16 %v588
        %v688 = vunpack.c.h.b16 %v588
        %v689 = vunpack.c.l.b16 %v589
        %v690 = vunpack.c.h.b16 %v589
        %v691 = vunpack.c.l.b16 %v590
        %v692 = vunpack.c.h.b16 %v590
        %v693 = vunpack.c.l.b16 %v591
        %v694 = vunpack.c.h.b16 %v591
        %v695 = vunpack.c.l.b16 %v592
        %v696 = vunpack.c.h.b16 %v592
        %v697 = vunpack.c.l.b16 %v593
        %v698 = vunpack.c.h.b16 %v593
        %v699 = vunpack.c.l.b16 %v594
        %v700 = vunpack.c.h.b16 %v594
        %v701 = vunpack.c.l.b16 %v595
        %v702 = vunpack.c.h.b16 %v595
        %v703 = vunpack.c.l.b16 %v596
        %v704 = vunpack.c.h.b16 %v596
        %v705 = vpack.c.b16 %v643, %v641
        %v706 = vpack.c.b16 %v644, %v642
        %v707 = vpack.c.b16 %v647, %v645
        %v708 = vpack.c.b16 %v648, %v646
        %v709 = vpack.c.b16 %v651, %v649
        %v710 = vpack.c.b16 %v652, %v650
        %v711 = vpack.c.b16 %v655, %v653
        %v712 = vpack.c.b16 %v656, %v654
        %v713 = vpack.c.b16 %v659, %v657
        %v714 = vpack.c.b16 %v660, %v658
        %v715 = vpack.c.b16 %v663, %v661
        %v716 = vpack.c.b16 %v664, %v662
        %v717 = vpack.c.b16 %v667, %v665
        %v718 = vpack.c.b16 %v668, %v666
        %v719 = vpack.c.b16 %v671, %v669
        %v720 = vpack.c.b16 %v672, %v670
        %v721 = vpack.c.b16 %v675, %v673
        %v722 = vpack.c.b16 %v676, %v674
        %v723 = vpack.c.b16 %v679, %v677
        %v724 = vpack.c.b16 %v680, %v678
        %v725 = vpack.c.b16 %v683, %v681
        %v726 = vpack.c.b16 %v684, %v682
        %v727 = vpack.c.b16 %v687, %v685
        %v728 = vpack.c.b16 %v688, %v686
        %v729 = vpack.c.b16 %v691, %v689
        %v730 = vpack.c.b16 %v692, %v690
        %v731 = vpack.c.b16 %v695, %v693
        %v732 = vpack.c.b16 %v696, %v694
        %v733 = vpack.c.b16 %v699, %v697
        %v734 = vpack.c.b16 %v700, %v698
        %v735 = vpack.c.b16 %v703, %v701
        %v736 = vpack.c.b16 %v704, %v702
        %769 = vmatprep.subr.bf16.mxu0 %v720
        %770 = vmatpush1.bf16.msra.mxu0 %v719
        %771 = vmatprep.subr.bf16.mxu0 %v718
        %772 = vmatpush1.bf16.msra.mxu0 %v717
        %773 = vmatprep.subr.bf16.mxu0 %v716
        %774 = vmatpush1.bf16.msra.mxu0 %v715
        %775 = vmatprep.subr.bf16.mxu0 %v714
        %776 = vmatpush1.bf16.msra.mxu0 %v713
        %777 = vmatprep.subr.bf16.mxu0 %v712
        %778 = vmatpush1.bf16.msra.mxu0 %v711
        %779 = vmatprep.subr.bf16.mxu0 %v710
        %780 = vmatpush1.bf16.msra.mxu0 %v709
        %781 = vmatprep.subr.bf16.mxu0 %v708
        %782 = vmatpush1.bf16.msra.mxu0 %v707
        %783 = vmatprep.subr.bf16.mxu0 %v706
        %784 = vmatpush1.bf16.msra.mxu0 %v705
        %785 = vmatprep.subr.bf16.mxu0 %v736
        %786 = vmatpush2.bf16.msra.mxu0 %v735
        %787 = vmatprep.subr.bf16.mxu0 %v734
        %788 = vmatpush2.bf16.msra.mxu0 %v733
        %789 = vmatprep.subr.bf16.mxu0 %v732
        %790 = vmatpush2.bf16.msra.mxu0 %v731
        %791 = vmatprep.subr.bf16.mxu0 %v730
        %792 = vmatpush2.bf16.msra.mxu0 %v729
        %793 = vmatprep.subr.bf16.mxu0 %v728
        %794 = vmatpush2.bf16.msra.mxu0 %v727
        %795 = vmatprep.subr.bf16.mxu0 %v726
        %796 = vmatpush2.bf16.msra.mxu0 %v725
        %797 = vmatprep.subr.bf16.mxu0 %v724
        %798 = vmatpush2.bf16.msra.mxu0 %v723
        %799 = vmatprep.subr.bf16.mxu0 %v722
        %800 = vmatpush2.bf16.msra.mxu0 %v721
        %801 = vmatprep.mubr.bf16.mxu0 %v550
        %802 = vmatmul.mubr.bf16.gmra.mxu0 %v549
        %v803 = vpop.f32.mrf.mxu0
        %v804 = vadd.f32 %v602, %v803
        %v805 = vpop.f32.mrf.mxu0
        %v806 = vadd.f32 %v606, %v805
        %v807 = vpop.f32.mrf.mxu0
        %v808 = vadd.f32 %v602, %v807
        %v809 = vpop.f32.mrf.mxu0
        %v810 = vadd.f32 %v606, %v809
        %811 = vmatprep.mubr.bf16.mxu0 %v552
        %812 = vmatmul.mubr.bf16.gmra.mxu0 %v551
        %v813 = vpop.f32.mrf.mxu0
        %v814 = vadd.f32 %v602, %v813
        %v815 = vpop.f32.mrf.mxu0
        %v816 = vadd.f32 %v606, %v815
        %v817 = vpop.f32.mrf.mxu0
        %v818 = vadd.f32 %v602, %v817
        %v819 = vpop.f32.mrf.mxu0
        %v820 = vadd.f32 %v606, %v819
        %821 = vmatprep.mubr.bf16.mxu0 %v554
        %822 = vmatmul.mubr.bf16.gmra.mxu0 %v553
        %v823 = vpop.f32.mrf.mxu0
        %v824 = vadd.f32 %v602, %v823
        %v825 = vpop.f32.mrf.mxu0
        %v826 = vadd.f32 %v606, %v825
        %v827 = vpop.f32.mrf.mxu0
        %v828 = vadd.f32 %v602, %v827
        %v829 = vpop.f32.mrf.mxu0
        %v830 = vadd.f32 %v606, %v829
        %831 = vmatprep.mubr.bf16.mxu0 %v556
        %832 = vmatmul.mubr.bf16.gmra.mxu0 %v555
        %v833 = vpop.f32.mrf.mxu0
        %v834 = vadd.f32 %v602, %v833
        %v835 = vpop.f32.mrf.mxu0
        %v836 = vadd.f32 %v606, %v835
        %v837 = vpop.f32.mrf.mxu0
        %v838 = vadd.f32 %v602, %v837
        %v839 = vpop.f32.mrf.mxu0
        %v840 = vadd.f32 %v606, %v839
        %841 = vmatprep.mubr.bf16.mxu0 %v558
        %842 = vmatmul.mubr.bf16.gmra.mxu0 %v557
        %v843 = vpop.f32.mrf.mxu0
        %v844 = vadd.f32 %v602, %v843
        %v845 = vpop.f32.mrf.mxu0
        %v846 = vadd.f32 %v606, %v845
        %v847 = vpop.f32.mrf.mxu0
        %v848 = vadd.f32 %v602, %v847
        %v849 = vpop.f32.mrf.mxu0
        %v850 = vadd.f32 %v606, %v849
        %851 = vmatprep.mubr.bf16.mxu0 %v560
        %852 = vmatmul.mubr.bf16.gmra.mxu0 %v559
        %v853 = vpop.f32.mrf.mxu0
        %v854 = vadd.f32 %v602, %v853
        %v855 = vpop.f32.mrf.mxu0
        %v856 = vadd.f32 %v606, %v855
        %v857 = vpop.f32.mrf.mxu0
        %v858 = vadd.f32 %v602, %v857
        %v859 = vpop.f32.mrf.mxu0
        %v860 = vadd.f32 %v606, %v859
        %861 = vmatprep.mubr.bf16.mxu0 %v562
        %862 = vmatmul.mubr.bf16.gmra.mxu0 %v561
        %v863 = vpop.f32.mrf.mxu0
        %v864 = vadd.f32 %v602, %v863
        %v865 = vpop.f32.mrf.mxu0
        %v866 = vadd.f32 %v606, %v865
        %v867 = vpop.f32.mrf.mxu0
        %v868 = vadd.f32 %v602, %v867
        %v869 = vpop.f32.mrf.mxu0
        %v870 = vadd.f32 %v606, %v869
        %871 = vmatprep.mubr.bf16.mxu0 %v564
        %872 = vmatmul.mubr.bf16.gmra.mxu0 %v563
        %v873 = vpop.f32.mrf.mxu0
        %v874 = vadd.f32 %v602, %v873
        %v875 = vpop.f32.mrf.mxu0
        %v876 = vadd.f32 %v606, %v875
        %v877 = vpop.f32.mrf.mxu0
        %v878 = vadd.f32 %v602, %v877
        %v879 = vpop.f32.mrf.mxu0
        %v880 = vadd.f32 %v606, %v879
        %881 = vdwg.mxu0
        %v882 = vmax.f32 %v804, 0.0
        %v883 = vmax.f32 %v806, 0.0
        %v884 = vmax.f32 %v808, 0.0
        %v885 = vmax.f32 %v810, 0.0
        %v886 = vmax.f32 %v814, 0.0
        %v887 = vmax.f32 %v816, 0.0
        %v888 = vmax.f32 %v818, 0.0
        %v889 = vmax.f32 %v820, 0.0
        %v890 = vmax.f32 %v824, 0.0
        %v891 = vmax.f32 %v826, 0.0
        %v892 = vmax.f32 %v828, 0.0
        %v893 = vmax.f32 %v830, 0.0
        %v894 = vmax.f32 %v834, 0.0
        %v895 = vmax.f32 %v836, 0.0
        %v896 = vmax.f32 %v838, 0.0
        %v897 = vmax.f32 %v840, 0.0
        %v898 = vmax.f32 %v844, 0.0
        %v899 = vmax.f32 %v846, 0.0
        %v900 = vmax.f32 %v848, 0.0
        %v901 = vmax.f32 %v850, 0.0
        %v902 = vmax.f32 %v854, 0.0
        %v903 = vmax.f32 %v856, 0.0
        %v904 = vmax.f32 %v858, 0.0
        %v905 = vmax.f32 %v860, 0.0
        %v906 = vmax.f32 %v864, 0.0
        %v907 = vmax.f32 %v866, 0.0
        %v908 = vmax.f32 %v868, 0.0
        %v909 = vmax.f32 %v870, 0.0
        %v910 = vmax.f32 %v874, 0.0
        %v911 = vmax.f32 %v876, 0.0
        %v912 = vmax.f32 %v878, 0.0
        %v913 = vmax.f32 %v880, 0.0
        %v914 = vld [vmem:[%s5] sm:$0x3]
        %v916 = vlaneseq
        %v917 = vshrl.u32 %v916, 7
        %v918 = vsub.s32 0, %v917
        %v919 = vrot.slane %v914, %v918
        %v920 = vlaneseq
        %v921 = vshrl.u32 %v920, 7
        %v922 = vsub.s32 1, %v921
        %v923 = vrot.slane %v914, %v922
        %v926 = vmul.f32 %v882, %v919
        %v927 = vmul.f32 %v883, %v923
        %v928 = vmul.f32 %v884, %v919
        %v929 = vmul.f32 %v885, %v923
        %v930 = vmul.f32 %v886, %v919
        %v931 = vmul.f32 %v887, %v923
        %v932 = vmul.f32 %v888, %v919
        %v933 = vmul.f32 %v889, %v923
        %v934 = vmul.f32 %v890, %v919
        %v935 = vmul.f32 %v891, %v923
        %v936 = vmul.f32 %v892, %v919
        %v937 = vmul.f32 %v893, %v923
        %v938 = vmul.f32 %v894, %v919
        %v939 = vmul.f32 %v895, %v923
        %v940 = vmul.f32 %v896, %v919
        %v941 = vmul.f32 %v897, %v923
        %v942 = vmul.f32 %v898, %v919
        %v943 = vmul.f32 %v899, %v923
        %v944 = vmul.f32 %v900, %v919
        %v945 = vmul.f32 %v901, %v923
        %v946 = vmul.f32 %v902, %v919
        %v947 = vmul.f32 %v903, %v923
        %v948 = vmul.f32 %v904, %v919
        %v949 = vmul.f32 %v905, %v923
        %v950 = vmul.f32 %v906, %v919
        %v951 = vmul.f32 %v907, %v923
        %v952 = vmul.f32 %v908, %v919
        %v953 = vmul.f32 %v909, %v923
        %v954 = vmul.f32 %v910, %v919
        %v955 = vmul.f32 %v911, %v923
        %v956 = vmul.f32 %v912, %v919
        %v957 = vmul.f32 %v913, %v923
        %v958 = vadd.f32 %v926, %v927
        %959 = vadd.xlane.f32.xlu0 %v958
        %v960 = vpop.xlane.xlu0 %959
        %v961 = vadd.f32 %v928, %v929
        %962 = vadd.xlane.f32.xlu0 %v961
        %v963 = vpop.xlane.xlu0 %962
        %v964 = vadd.f32 %v930, %v931
        %965 = vadd.xlane.f32.xlu0 %v964
        %v966 = vpop.xlane.xlu0 %965
        %v967 = vadd.f32 %v932, %v933
        %968 = vadd.xlane.f32.xlu0 %v967
        %v969 = vpop.xlane.xlu0 %968
        %v970 = vadd.f32 %v934, %v935
        %971 = vadd.xlane.f32.xlu0 %v970
        %v972 = vpop.xlane.xlu0 %971
        %v973 = vadd.f32 %v936, %v937
        %974 = vadd.xlane.f32.xlu0 %v973
        %v975 = vpop.xlane.xlu0 %974
        %v976 = vadd.f32 %v938, %v939
        %977 = vadd.xlane.f32.xlu0 %v976
        %v978 = vpop.xlane.xlu0 %977
        %v979 = vadd.f32 %v940, %v941
        %980 = vadd.xlane.f32.xlu0 %v979
        %v981 = vpop.xlane.xlu0 %980
        %v982 = vadd.f32 %v942, %v943
        %983 = vadd.xlane.f32.xlu0 %v982
        %v984 = vpop.xlane.xlu0 %983
        %v985 = vadd.f32 %v944, %v945
        %986 = vadd.xlane.f32.xlu0 %v985
        %v987 = vpop.xlane.xlu0 %986
        %v988 = vadd.f32 %v946, %v947
        %989 = vadd.xlane.f32.xlu0 %v988
        %v990 = vpop.xlane.xlu0 %989
        %v991 = vadd.f32 %v948, %v949
        %992 = vadd.xlane.f32.xlu0 %v991
        %v993 = vpop.xlane.xlu0 %992
        %v994 = vadd.f32 %v950, %v951
        %995 = vadd.xlane.f32.xlu0 %v994
        %v996 = vpop.xlane.xlu0 %995
        %v997 = vadd.f32 %v952, %v953
        %998 = vadd.xlane.f32.xlu0 %v997
        %v999 = vpop.xlane.xlu0 %998
        %v1000 = vadd.f32 %v954, %v955
        %1001 = vadd.xlane.f32.xlu0 %v1000
        %v1002 = vpop.xlane.xlu0 %1001
        %v1003 = vadd.f32 %v956, %v957
        %1004 = vadd.xlane.f32.xlu0 %v1003
        %v1005 = vpop.xlane.xlu0 %1004
        %v1006 = vld [vmem:[#allocation2] sm:$0x1]
        %v1008 = vlaneseq
        %v1009 = vshrl.u32 %v1008, 7
        %v1010 = vsub.s32 0, %v1009
        %v1011 = vrot.slane %v1006, %v1010
        %v1013 = vadd.f32 %v960, %v1011
        %v1014 = vadd.f32 %v963, %v1011
        %v1015 = vadd.f32 %v966, %v1011
        %v1016 = vadd.f32 %v969, %v1011
        %v1017 = vadd.f32 %v972, %v1011
        %v1018 = vadd.f32 %v975, %v1011
        %v1019 = vadd.f32 %v978, %v1011
        %v1020 = vadd.f32 %v981, %v1011
        %v1021 = vadd.f32 %v984, %v1011
        %v1022 = vadd.f32 %v987, %v1011
        %v1023 = vadd.f32 %v990, %v1011
        %v1024 = vadd.f32 %v993, %v1011
        %v1025 = vadd.f32 %v996, %v1011
        %v1026 = vadd.f32 %v999, %v1011
        %v1027 = vadd.f32 %v1002, %v1011
        %v1028 = vadd.f32 %v1005, %v1011
        %1030 = vset.pattern.permute.xlu0 0
        %1031 = vperm.xlu0 %1030, %v1013
        %v1032 = vpop.permute.xlu0 %1031
        %1035 = vset.pattern.permute.xlu0 0
        %1036 = vperm.xlu0 %1035, %v1014
        %v1037 = vpop.permute.xlu0 %1036
        %1040 = vset.pattern.permute.xlu0 0
        %1041 = vperm.xlu0 %1040, %v1015
        %v1042 = vpop.permute.xlu0 %1041
        %1045 = vset.pattern.permute.xlu0 0
        %1046 = vperm.xlu0 %1045, %v1016
        %v1047 = vpop.permute.xlu0 %1046
        %1050 = vset.pattern.permute.xlu0 0
        %1051 = vperm.xlu0 %1050, %v1017
        %v1052 = vpop.permute.xlu0 %1051
        %1055 = vset.pattern.permute.xlu0 0
        %1056 = vperm.xlu0 %1055, %v1018
        %v1057 = vpop.permute.xlu0 %1056
        %1060 = vset.pattern.permute.xlu0 0
        %1061 = vperm.xlu0 %1060, %v1019
        %v1062 = vpop.permute.xlu0 %1061
        %1065 = vset.pattern.permute.xlu0 0
        %1066 = vperm.xlu0 %1065, %v1020
        %v1067 = vpop.permute.xlu0 %1066
        %1070 = vset.pattern.permute.xlu0 0
        %1071 = vperm.xlu0 %1070, %v1021
        %v1072 = vpop.permute.xlu0 %1071
        %1075 = vset.pattern.permute.xlu0 0
        %1076 = vperm.xlu0 %1075, %v1022
        %v1077 = vpop.permute.xlu0 %1076
        %1080 = vset.pattern.permute.xlu0 0
        %1081 = vperm.xlu0 %1080, %v1023
        %v1082 = vpop.permute.xlu0 %1081
        %1085 = vset.pattern.permute.xlu0 0
        %1086 = vperm.xlu0 %1085, %v1024
        %v1087 = vpop.permute.xlu0 %1086
        %1090 = vset.pattern.permute.xlu0 0
        %1091 = vperm.xlu0 %1090, %v1025
        %v1092 = vpop.permute.xlu0 %1091
        %1095 = vset.pattern.permute.xlu0 0
        %1096 = vperm.xlu0 %1095, %v1026
        %v1097 = vpop.permute.xlu0 %1096
        %1100 = vset.pattern.permute.xlu0 0
        %1101 = vperm.xlu0 %1100, %v1027
        %v1102 = vpop.permute.xlu0 %1101
        %1105 = vset.pattern.permute.xlu0 0
        %1106 = vperm.xlu0 %1105, %v1028
        %v1107 = vpop.permute.xlu0 %1106
        %1109 = vst [vmem:[%s289] sm:$0xff] %v1032
        %1110 = vst [vmem:[%s289 + $0x8] sm:$0xff] %v1037
        %1111 = vst [vmem:[%s289 + $0x10] sm:$0xff] %v1042
        %1112 = vst [vmem:[%s289 + $0x18] sm:$0xff] %v1047
        %1113 = vst [vmem:[%s289 + $0x20] sm:$0xff] %v1052
        %1114 = vst [vmem:[%s289 + $0x28] sm:$0xff] %v1057
        %1115 = vst [vmem:[%s289 + $0x30] sm:$0xff] %v1062
        %1116 = vst [vmem:[%s289 + $0x38] sm:$0xff] %v1067
        %1117 = vst [vmem:[%s289 + $0x40] sm:$0xff] %v1072
        %1118 = vst [vmem:[%s289 + $0x48] sm:$0xff] %v1077
        %1119 = vst [vmem:[%s289 + $0x50] sm:$0xff] %v1082
        %1120 = vst [vmem:[%s289 + $0x58] sm:$0xff] %v1087
        %1121 = vst [vmem:[%s289 + $0x60] sm:$0xff] %v1092
        %1122 = vst [vmem:[%s289 + $0x68] sm:$0xff] %v1097
        %1123 = vst [vmem:[%s289 + $0x70] sm:$0xff] %v1102
        %1124 = vst [vmem:[%s289 + $0x78] sm:$0xff] %v1107
        %s1125 = sand.u32 %s184, 1
        %s1126 = scalar_lea.sflag [#allocation5], %s1125
        %s1127 = sand.u32 %s184, 1
        %s1128 = smul.addr %s1127, 128
        %s1129 = scalar_lea.vmem [#allocation6], %s1128
        // Predicated region
        $region53: #{tpu_custom_call.1} parent=47 // pred_check
          %p1130 = pneg %p194
        $region54: #{tpu_custom_call.1} parent=47 // pred_check_branch
          %1132 = sbr.rel (%p1130) target = $region56
        $region55: #{tpu_custom_call.1} parent=47 // pred_region
          %s1133 = smul.u32 16, %s24
          %s1135 = ssub.s32 2048, 2048
          %1136 = vsyncadd %s1126, %s1135
          %s1137 = smul.addr %s1133, 128
          %s1138 = scalar_lea.hbm %s7, %s1137
          %s1139 = sshll.u32 %s1129, 4
          %s1140 = int_to_ptr.vmem [resolvable:$true] %s1139
          %1145 = dma.vmem_to_hbm [thread:$0]  %s1140, 2048, %s1138, %s1126, 128, 128, 8
        $region56: #{tpu_custom_call.1} parent=47 // pred_fallthru
          _
      $region48: #{tpu_custom_call.1} parent=5 // pred_fallthru
        _
      %p1146 = scmp.le.s32.totalorder 2, %s19
      // Predicated region
      $region57: #{tpu_custom_call.1} parent=5 // pred_check
        %p1147 = pneg %p1146
      $region58: #{tpu_custom_call.1} parent=5 // pred_check_branch
        %1149 = sbr.rel (%p1147) target = $region60
      $region59: #{tpu_custom_call.1} parent=5 // pred_region
        %s1150 = ssub.s32 %s19, 2
        // Predicated region
        $region61: #{tpu_custom_call.1} parent=59 // pred_check
          %p1151 = pneg %p200
        $region62: #{tpu_custom_call.1} parent=59 // pred_check_branch
          %1153 = sbr.rel (%p1151) target = $region64
        $region63: #{tpu_custom_call.1} parent=59 // pred_region
          %s1154 = sand.u32 %s185, 1
          %s1155 = scalar_lea.sflag [#allocation5], %s1154
          %s1156 = sand.u32 %s185, 1
          %s1157 = smul.addr %s1156, 128
          %s1158 = scalar_lea.vmem [#allocation6], %s1157
          %1159 = dma.done %s1155, 2048
        $region64: #{tpu_custom_call.1} parent=59 // pred_fallthru
          _
      $region60: #{tpu_custom_call.1} parent=5 // pred_fallthru
        _
    $region6: #{tpu_custom_call.1} parent=1 // loop_footer
      %s23 = sadd.s32 1, %s19
    $region7: #{tpu_custom_call.1} parent=1 // loop_footer_branch
      %18 = sbr.rel target = $region3
    $region8: #{tpu_custom_call.1} parent=1 // loop_exit
      _
    %1160 = vsyncpa [#allocation4], 1
    %s1161 = scalar_lea.sflag [#allocation4], 1
    %1162 = vsyncpa %s1161, 1
    %1163 = vsyncpa [#allocation5], 1
    %s1164 = scalar_lea.sflag [#allocation5], 1
    %1165 = vsyncpa %s1164, 1

</llo_original>
